<compile_context>
chip_gen: v7x
topology: tpu7x:2x2x1
jax: 0.10.0
libtpu: 0.0.40
codegen_flags: <defaults>
</compile_context>

<pallas_src>
import jax
import jax.numpy as jnp
from jax.experimental import pallas as pl
from jax.experimental.pallas import tpu as pltpu


def _constant_input_kernel(const_ref, out_ref):
    # const_ref: (1, tc) slice of the pre-tiled constant row (resident per lane tile).
    # out_ref:   (tb, tc) output tile -> sublane broadcast + full-width stores.
    out_ref[...] = jnp.broadcast_to(const_ref[...], out_ref.shape)


def _pick_fold(batch, css):
    """Pick k | batch so the flattened output is (batch // k, k * css).

    Folding k batch elements into the lane axis makes the last dim lane-dense
    (a multiple of 128 and >= 512 when possible) even for tiny C*S*S.
    """
    if css % 128 == 0 and css >= 512:
        return 1  # already lane-dense; keep batch on the sublane axis
    divisors = [k for k in range(1, batch + 1) if batch % k == 0]

    def score(k):
        lanes = k * css
        rows = batch // k
        return (
            lanes % 128 == 0,      # unmasked, 128-aligned stores
            lanes >= 512,          # long contiguous rows (DMA sweet spot)
            lanes <= 4096,         # don't make rows absurdly wide
            rows >= 8,             # keep some sublane density if we can
            -abs(lanes - 1024),    # prefer ~1024-lane rows
        )

    return max(divisors, key=score)


def _choose_tiles(rows, lanes, itemsize):
    """(tb, tc) sized so double-buffered out + const blocks fit scoped VMEM."""
    sublane = 8 * max(1, 4 // itemsize)          # 8 f32 / 16 bf16 / 32 int8
    block_budget = 6 * 1024 * 1024               # per output block (x2 dbl-buffer)

    # Lane tile: cap so a sublane-minimal output block still fits the budget
    # and the double-buffered constant block stays small.
    max_tc = max(128, (block_budget // (sublane * itemsize)) // 128 * 128)
    tc = lanes if lanes <= max_tc else max_tc

    # Row tile: fill the remaining block budget.
    tb = max(1, block_budget // (tc * itemsize))
    if tb >= rows:
        tb = rows
    else:
        tb = min(rows, max(sublane, (tb // sublane) * sublane))

    # If everything landed in a single grid step but the output is big enough
    # to care, split the row axis so both v7x TensorCores get a tile.
    total_bytes = rows * lanes * itemsize
    if (pl.cdiv(rows, tb) == 1 and pl.cdiv(lanes, tc) == 1
            and rows >= 2 * sublane and total_bytes >= (2 << 20)):
        half = (rows + 1) // 2
        tb = min(rows, max(sublane, ((half + sublane - 1) // sublane) * sublane))

    return tb, tc


def constant_input_forward(x, const_param, *, min_pallas_bytes=1 << 20):
    """Replicates ConstantInput.forward.

    Args:
      x: (batch, ...) array; only x.shape[0] (batch) is used.
      const_param: (1, C, S, S) learned constant.
      min_pallas_bytes: below this output size, use a fused jnp.broadcast_to
        fast path instead of launching the kernel.

    Returns:
      (batch, C, S, S) array with const_param's dtype.
    """
    batch = x.shape[0]
    _, C, S1, S2 = const_param.shape
    css = C * S1 * S2
    itemsize = jnp.dtype(const_param.dtype).itemsize
    out_bytes = batch * css * itemsize

    if out_bytes < min_pallas_bytes:
        # Tiny constant: pallas_call launch + per-step overhead dominates; let
        # XLA fuse the broadcast into the consumer (no HBM round-trip).
        return jnp.broadcast_to(const_param, (batch, C, S1, S2))

    # Fold k batch elements into the lane axis: output viewed as (rows, lanes).
    k = _pick_fold(batch, css)
    lanes = k * css
    rows = batch // k

    # One-time, constant-sized pre-tile of the learned constant to one row.
    const_row = jnp.tile(const_param.reshape(1, css), (1, k))

    tb, tc = _choose_tiles(rows, lanes, itemsize)
    grid = (pl.cdiv(rows, tb), pl.cdiv(lanes, tc))

    out2d = pl.pallas_call(
        _constant_input_kernel,
        out_shape=jax.ShapeDtypeStruct((rows, lanes), const_param.dtype),
        grid=grid,
        in_specs=[
            # Same constant lane-slice for every row tile (stays resident).
            pl.BlockSpec((1, tc), lambda i, j: (0, j)),
        ],
        out_specs=pl.BlockSpec((tb, tc), lambda i, j: (i, j)),
        compiler_params=pltpu.CompilerParams(
            dimension_semantics=("parallel", "parallel"),
            vmem_limit_bytes=32 * 1024 * 1024,
        ),
        cost_estimate=pl.CostEstimate(
            flops=0,
            transcendentals=0,
            bytes_accessed=out_bytes + lanes * itemsize,
        ),
    )(const_row)

    # Back to NCHW to match the PyTorch module's output layout (free reshape).
    return out2d.reshape(batch, C, S1, S2)


if __name__ == "__main__":
    key = jax.random.PRNGKey(0)
    k_param, k_x = jax.random.split(key)

    channel = 4
    size = 4      # module default
    batch = 2

    # Deterministic "learned" constant, matching nn.Parameter(torch.randn(1,C,S,S)).
    const_param = jax.random.normal(
        k_param, (1, channel, size, size), dtype=jnp.float32
    )
    # Dummy forward input; only its batch dim matters. NCHW layout.
    x = jax.random.normal(k_x, (batch, channel, 16, 16), dtype=jnp.float32)

    ref = jnp.broadcast_to(const_param, (batch, channel, size, size))

    # Force the Pallas path (past the tiny-size fast path) so the kernel runs.
    out = constant_input_forward(x, const_param, min_pallas_bytes=0)
    out = jax.block_until_ready(out)
    assert out.shape == (batch, channel, size, size)
    assert jnp.array_equal(out, ref)

    # Default path: tiny constants take the fused broadcast fast path.
    out_fast = jax.block_until_ready(constant_input_forward(x, const_param))
    assert jnp.array_equal(out_fast, ref)

    print("KERNEL_OK")
</pallas_src>

<mosaic_0001>
module attributes {stable_mosaic.version = 11 : i64} {
  func.func @_constant_input_kernel(%arg0: i32, %arg1: i32, %arg2: memref<1x128xf32, #tpu.memory_space<vmem>>, %arg3: memref<1x128xf32, #tpu.memory_space<vmem>>) attributes {dimension_semantics = [#tpu.dimension_semantics<parallel>, #tpu.dimension_semantics<parallel>], iteration_bounds = array<i64: 1, 1>, scalar_prefetch = 0 : i64, scratch_operands = 0 : i64, tpu.core_type = #tpu.core_type<tc>, window_params = [{transform_indices = @transform_0, window_bounds = array<i64: 1, 128>}, {transform_indices = @transform_1, window_bounds = array<i64: 1, 128>}]} {
    %c0 = arith.constant 0 : index
    %c0_0 = arith.constant 0 : index
    %0 = vector.load %arg2[%c0, %c0_0] : memref<1x128xf32, #tpu.memory_space<vmem>>, vector<1x128xf32>
    %c0_1 = arith.constant 0 : index
    %c0_2 = arith.constant 0 : index
    %1 = vector.load %arg3[%c0_1, %c0_2] : memref<1x128xf32, #tpu.memory_space<vmem>>, vector<1x128xf32>
    tpu.vector_store %arg3[%c0_1, %c0_2], %0 {strides = array<i32>} : memref<1x128xf32, #tpu.memory_space<vmem>>, vector<1x128xf32>,
    return
  }
  func.func @transform_0(%arg0: i32, %arg1: i32) -> (i32, i32) {
    %c0_i32 = arith.constant 0 : i32
    %c0_i32_0 = arith.constant 0 : i32
    return %c0_i32, %arg1 : i32, i32
  }
  func.func @transform_1(%arg0: i32, %arg1: i32) -> (i32, i32) {
    %c0_i32 = arith.constant 0 : i32
    return %arg0, %arg1 : i32, i32
  }
}

</mosaic_0001>

<llo_original>
// kernel: tpu_custom_call.1
$region0: #{tpu_custom_call.1}
  #allocation0 [shape = 'u32[]', space=smem, size = 0x4, offset = 0x4, fixed_abs, tag = 'smem constant byte address 0x4 - core index']
  #allocation1 [shape = 'u32[144,128]{1,0:T(1,128)}', space=vmem, size = 0x12000, scoped, tag = 'internal scratch']
  %s0 = inlined_call_operand.hbm [shape: f32[1,128], index: 0, kind: input, shape index: {}]
  %s1 = inlined_call_operand.hbm [shape: f32[1,128], index: 1, kind: output, shape index: {}]
  %s2 = sld [smem:[#allocation0]]
  $region18: #{tpu_custom_call.1} parent=0
    _
  %s4 = ssub.s32 1, %s2
  %s5 = scalar_select 0, %s4, %s2
  $region1: #{tpu_custom_call.1} parent=0
    #allocation2 [shape = 'u8[512]{0}', space=vmem, size = 0x400, scoped, tag = 'input window, operand 0, single buffered']
    #allocation3 [shape = 's32[1]{0}', space=sflag, size = 0x4, scoped, tag = 'scoped memory for tpu_custom_call.1']
    #allocation4 [shape = 's32[1]{0}', space=sflag, size = 0x4, scoped, tag = 'scoped memory for tpu_custom_call.1']
    #allocation5 [shape = 'u8[512]{0}', space=vmem, size = 0x400, scoped, tag = 'output window, operand 0, single buffered']
    %6 = vsyncpa [#allocation3], 0
    %7 = vsyncpa [#allocation4], 0
    // Predicated region
    $region2: #{tpu_custom_call.1} parent=1 // pred_check
      _
    $region3: #{tpu_custom_call.1} parent=1 // pred_check_branch
      %9 = sbr.rel (0) target = $region5
    $region4: #{tpu_custom_call.1} parent=1 // pred_region
      %s11 = ssub.s32 16, 16
      %12 = vsyncadd [#allocation3], %s11
      %s14 = sshll.u32 [#allocation2], 4
      %s15 = int_to_ptr.vmem [resolvable:$true] %s14
      %17 = dma.hbm_to_vmem [thread:$0]  %s0, 16, %s15, [#allocation3]
    $region5: #{tpu_custom_call.1} parent=1 // pred_fallthru
      _
    // Predicated region
    $region6: #{tpu_custom_call.1} parent=1 // pred_check
      _
    $region7: #{tpu_custom_call.1} parent=1 // pred_check_branch
      %19 = sbr.rel (0) target = $region9
    $region8: #{tpu_custom_call.1} parent=1 // pred_region
      %20 = dma.done [#allocation3], 16
    $region9: #{tpu_custom_call.1} parent=1 // pred_fallthru
      _
    %v21 = vld [vmem:[#allocation2] sm:$0x1]
    %22 = vst [vmem:[#allocation5] sm:$0x1] %v21
    // Predicated region
    $region10: #{tpu_custom_call.1} parent=1 // pred_check
      _
    $region11: #{tpu_custom_call.1} parent=1 // pred_check_branch
      %24 = sbr.rel (0) target = $region13
    $region12: #{tpu_custom_call.1} parent=1 // pred_region
      %s26 = ssub.s32 16, 16
      %27 = vsyncadd [#allocation4], %s26
      %s29 = sshll.u32 [#allocation5], 4
      %s30 = int_to_ptr.vmem [resolvable:$true] %s29
      %32 = dma.vmem_to_hbm [thread:$0]  %s30, 16, %s1, [#allocation4]
    $region13: #{tpu_custom_call.1} parent=1 // pred_fallthru
      _
    // Predicated region
    $region14: #{tpu_custom_call.1} parent=1 // pred_check
      _
    $region15: #{tpu_custom_call.1} parent=1 // pred_check_branch
      %34 = sbr.rel (0) target = $region17
    $region16: #{tpu_custom_call.1} parent=1 // pred_region
      %35 = dma.done [#allocation4], 16
    $region17: #{tpu_custom_call.1} parent=1 // pred_fallthru
      _
    %36 = vsyncpa [#allocation3], 1
    %37 = vsyncpa [#allocation4], 1

</llo_original>
